<compile_context>
chip_gen: v7x
topology: tpu7x:2x2x1
jax: 0.10.0
libtpu: 0.0.40
codegen_flags: <defaults>
</compile_context>

<pallas_src>
import functools
import numpy as np
import jax
import jax.numpy as jnp
from jax import lax
from jax.experimental import pallas as pl
from jax.experimental.pallas import tpu as pltpu

# ----------------------------- model config ---------------------------------
C = 32                 # scalar hidden channels (hidden_irreps = 32x0e)
Z = 4                  # num_elements
LMAX = 3
NUM_L = LMAX + 1
L2 = NUM_L * NUM_L     # 16 spherical-harmonic components
NUM_BESSEL = 8
RAD_HIDDEN = 64
R_MAX = 5.0
P_CUT = 5
AVG_NEIGH = 8.0
INV_AVG = 1.0 / AVG_NEIGH
H = 1                  # number of heads
MLP_DIM = 16           # MLP_irreps = 16x0e
NUM_INTERACTIONS = 2
SCALE = 0.5            # atomic_inter_scale
SHIFT = 0.1            # atomic_inter_shift
L_OF_LM = tuple(l for l in range(NUM_L) for _ in range(2 * l + 1))


def _round_up(x, m):
    return (x + m - 1) // m * m


def _pick_tile(n, candidates=(512, 256, 128, 64, 32, 16, 8)):
    for t in candidates:
        if n % t == 0:
            return t
    return n


def _silu(x):
    return x * jax.nn.sigmoid(x)


def _bf16(x):
    return x.astype(jnp.bfloat16)


# ------------------------------ Pallas kernels -------------------------------
def _embed_kernel(attrs_ref, emb_w_ref, ae_ref, feats_ref, e0_ref):
    attrs = attrs_ref[...]
    feats_ref[...] = jnp.dot(attrs, emb_w_ref[...], preferred_element_type=jnp.float32)
    e0_ref[...] = jnp.dot(attrs, ae_ref[...], preferred_element_type=jnp.float32)


def pallas_embed(attrs_p, emb_w, atomic_energies):
    """Fused LinearNodeEmbeddingBlock + AtomicEnergiesBlock."""
    num_p = attrs_p.shape[0]
    tn = _pick_tile(num_p)
    return pl.pallas_call(
        _embed_kernel,
        out_shape=(jax.ShapeDtypeStruct((num_p, C), jnp.float32),
                   jax.ShapeDtypeStruct((num_p, H), jnp.float32)),
        grid_spec=pltpu.PrefetchScalarGridSpec(
            num_scalar_prefetch=0, grid=(num_p // tn,),
            in_specs=[
                pl.BlockSpec((tn, Z), lambda i: (i, 0)),
                pl.BlockSpec((Z, C), lambda i: (0, 0)),
                pl.BlockSpec((Z, H), lambda i: (0, 0)),
            ],
            out_specs=[
                pl.BlockSpec((tn, C), lambda i: (i, 0)),
                pl.BlockSpec((tn, H), lambda i: (i, 0)),
            ]),
        compiler_params=pltpu.CompilerParams(dimension_semantics=("parallel",)),
    )(attrs_p, emb_w, atomic_energies)


def _prologue_sc_kernel(feats_ref, attrs_ref, up_w_ref, skip_w_ref, nf_up_ref, sc_ref):
    f = feats_ref[...]
    nf_up_ref[...] = jnp.dot(_bf16(f), _bf16(up_w_ref[...]),
                             preferred_element_type=jnp.float32)
    # node_attrs is one-hot -> FCTP skip is an element-indexed [C,C] linear.
    attrs = attrs_ref[...]
    acc = jnp.zeros(sc_ref.shape, jnp.float32)
    for z in range(Z):
        acc = acc + jnp.dot(_bf16(attrs[:, z:z + 1] * f), _bf16(skip_w_ref[z]),
                            preferred_element_type=jnp.float32)
    sc_ref[...] = acc


def _prologue_kernel(feats_ref, up_w_ref, nf_up_ref):
    nf_up_ref[...] = jnp.dot(_bf16(feats_ref[...]), _bf16(up_w_ref[...]),
                             preferred_element_type=jnp.float32)


def pallas_node_prologue(node_feats, attrs_p, layer, use_sc):
    num_p = node_feats.shape[0]
    tn = _pick_tile(num_p)
    grid = (num_p // tn,)
    if use_sc:
        nf_up, sc = pl.pallas_call(
            _prologue_sc_kernel,
            out_shape=(jax.ShapeDtypeStruct((num_p, C), jnp.float32),
                       jax.ShapeDtypeStruct((num_p, C), jnp.float32)),
            grid_spec=pltpu.PrefetchScalarGridSpec(
                num_scalar_prefetch=0, grid=grid,
                in_specs=[
                    pl.BlockSpec((tn, C), lambda i: (i, 0)),
                    pl.BlockSpec((tn, Z), lambda i: (i, 0)),
                    pl.BlockSpec((C, C), lambda i: (0, 0)),
                    pl.BlockSpec((Z, C, C), lambda i: (0, 0, 0)),
                ],
                out_specs=[pl.BlockSpec((tn, C), lambda i: (i, 0)),
                           pl.BlockSpec((tn, C), lambda i: (i, 0))]),
            compiler_params=pltpu.CompilerParams(dimension_semantics=("parallel",)),
        )(node_feats, attrs_p, layer["lin_up_w"], layer["skip_w"])
        return nf_up, sc
    nf_up = pl.pallas_call(
        _prologue_kernel,
        out_shape=jax.ShapeDtypeStruct((num_p, C), jnp.float32),
        grid_spec=pltpu.PrefetchScalarGridSpec(
            num_scalar_prefetch=0, grid=grid,
            in_specs=[pl.BlockSpec((tn, C), lambda i: (i, 0)),
                      pl.BlockSpec((C, C), lambda i: (0, 0))],
            out_specs=pl.BlockSpec((tn, C), lambda i: (i, 0))),
        compiler_params=pltpu.CompilerParams(dimension_semantics=("parallel",)),
    )(node_feats, layer["lin_up_w"])
    return nf_up, None


def _edge_message_kernel(recv_ref, ef_ref, sh_ref, sf_ref,
                         w0_ref, w1_ref, w2_ref, w3_ref, wl_ref,
                         out_ref, msg_ref, *, te):
    """Fused: radial MLP -> channel-wise TP -> per-l linear -> scatter-sum."""
    t = pl.program_id(0)

    @pl.when(t == 0)
    def _():
        out_ref[...] = jnp.zeros_like(out_ref)

    # radial MLP (no biases; zero-padded edges stay exactly zero)
    h = _silu(jnp.dot(_bf16(ef_ref[...]), _bf16(w0_ref[...]),
                      preferred_element_type=jnp.float32))
    h = _silu(jnp.dot(_bf16(h), _bf16(w1_ref[...]), preferred_element_type=jnp.float32))
    h = _silu(jnp.dot(_bf16(h), _bf16(w2_ref[...]), preferred_element_type=jnp.float32))
    tpw = jnp.dot(_bf16(h), _bf16(w3_ref[...]), preferred_element_type=jnp.float32)

    sf = sf_ref[...]        # [te, C]   sender node features (lin_up output)
    sh = sh_ref[...]        # [te, L2]  spherical harmonics
    # channel-wise tensor product; the per-l message linear (+ 1/avg_neighbors)
    # is folded in here since it commutes with the edge scatter-sum.
    for l in range(NUM_L):
        base_l = sf * tpw[:, l * C:(l + 1) * C]                       # [te, C]
        mixed_l = INV_AVG * jnp.dot(_bf16(base_l), _bf16(wl_ref[l]),
                                    preferred_element_type=jnp.float32)
        for m in range(2 * l + 1):
            lm = l * l + m
            msg_ref[:, lm * C:(lm + 1) * C] = mixed_l * sh[:, lm:lm + 1]

    # index-based scatter-sum over the edges of this tile (O(E*F))
    base = t * te

    def body(e, carry):
        r = recv_ref[base + e]
        out_ref[pl.ds(r, 1), :] = out_ref[pl.ds(r, 1), :] + msg_ref[pl.ds(e, 1), :]
        return carry

    lax.fori_loop(0, te, body, 0)


def pallas_edge_message(recv_idx, edge_feats, sh, sf, layer, num_nodes_p):
    ep = edge_feats.shape[0]
    te = _pick_tile(ep, (256, 128, 64, 32, 16, 8))
    flops = ep * (2 * (NUM_BESSEL * RAD_HIDDEN + 2 * RAD_HIDDEN * RAD_HIDDEN
                       + RAD_HIDDEN * NUM_L * C)
                  + 2 * NUM_L * C * C + 6 * L2 * C)
    bytes_accessed = (ep * (NUM_BESSEL + L2 + C) * 4
                      + num_nodes_p * L2 * C * 4
                      + (NUM_BESSEL * RAD_HIDDEN + 2 * RAD_HIDDEN * RAD_HIDDEN
                         + RAD_HIDDEN * NUM_L * C + NUM_L * C * C) * 4)
    cost = pl.CostEstimate(flops=int(flops),
                           transcendentals=int(ep * 3 * RAD_HIDDEN),
                           bytes_accessed=int(bytes_accessed))
    return pl.pallas_call(
        functools.partial(_edge_message_kernel, te=te),
        out_shape=jax.ShapeDtypeStruct((num_nodes_p, L2 * C), jnp.float32),
        grid_spec=pltpu.PrefetchScalarGridSpec(
            num_scalar_prefetch=1, grid=(ep // te,),
            in_specs=[
                pl.BlockSpec((te, NUM_BESSEL), lambda t, r: (t, 0)),
                pl.BlockSpec((te, L2), lambda t, r: (t, 0)),
                pl.BlockSpec((te, C), lambda t, r: (t, 0)),
                pl.BlockSpec((NUM_BESSEL, RAD_HIDDEN), lambda t, r: (0, 0)),
                pl.BlockSpec((RAD_HIDDEN, RAD_HIDDEN), lambda t, r: (0, 0)),
                pl.BlockSpec((RAD_HIDDEN, RAD_HIDDEN), lambda t, r: (0, 0)),
                pl.BlockSpec((RAD_HIDDEN, NUM_L * C), lambda t, r: (0, 0)),
                pl.BlockSpec((NUM_L, C, C), lambda t, r: (0, 0, 0)),
            ],
            out_specs=pl.BlockSpec((num_nodes_p, L2 * C), lambda t, r: (0, 0)),
            scratch_shapes=[pltpu.VMEM((te, L2 * C), jnp.float32)]),
        compiler_params=pltpu.CompilerParams(dimension_semantics=("arbitrary",)),
        cost_estimate=cost,
    )(recv_idx, edge_feats, sh, sf,
      layer["rad_w0"], layer["rad_w1"], layer["rad_w2"], layer["rad_w3"],
      layer["lin_msg_wl"])


def _epilogue_kernel(msg_ref, attrs_ref, cw_ref, pw_ref, *rest, use_sc, nonlinear):
    idx = 0
    if use_sc:
        sc_ref = rest[idx]; idx += 1
    if nonlinear:
        r1_ref = rest[idx]; r2_ref = rest[idx + 1]; idx += 2
    else:
        r_ref = rest[idx]; idx += 1
    feats_out_ref = rest[idx]
    es_ref = rest[idx + 1]

    # EquivariantProductBasisBlock (correlation=1, 0e target): uses the lm=0
    # block of the message with element-dependent weights.
    a0 = msg_ref[:, 0:C]
    elem_w = jnp.dot(attrs_ref[...], cw_ref[...], preferred_element_type=jnp.float32)
    b = elem_w * a0
    out = jnp.dot(_bf16(b), _bf16(pw_ref[...]), preferred_element_type=jnp.float32)
    if use_sc:
        out = out + sc_ref[...]
    feats_out_ref[...] = out
    if nonlinear:
        hmid = _silu(jnp.dot(_bf16(out), _bf16(r1_ref[...]),
                             preferred_element_type=jnp.float32))
        es_ref[...] = jnp.dot(_bf16(hmid), _bf16(r2_ref[...]),
                              preferred_element_type=jnp.float32)
    else:
        es_ref[...] = jnp.dot(_bf16(out), _bf16(r_ref[...]),
                              preferred_element_type=jnp.float32)


def pallas_node_epilogue(message, attrs_p, sc, layer, use_sc, nonlinear):
    num_p = attrs_p.shape[0]
    tn = _pick_tile(num_p)
    grid = (num_p // tn,)
    # Only the first 4*C=128 lanes of the [Np, L2*C] message are needed
    # downstream (lm = 0..3), so DMA just that lane block.
    in_specs = [
        pl.BlockSpec((tn, 4 * C), lambda i: (i, 0)),
        pl.BlockSpec((tn, Z), lambda i: (i, 0)),
        pl.BlockSpec((Z, C), lambda i: (0, 0)),
        pl.BlockSpec((C, C), lambda i: (0, 0)),
    ]
    args = [message, attrs_p, layer["contract_w"], layer["prod_lin_w"]]
    if use_sc:
        in_specs.append(pl.BlockSpec((tn, C), lambda i: (i, 0)))
        args.append(sc)
    if nonlinear:
        in_specs += [pl.BlockSpec((C, MLP_DIM), lambda i: (0, 0)),
                     pl.BlockSpec((MLP_DIM, H), lambda i: (0, 0))]
        args += [layer["readout_w1"], layer["readout_w2"]]
    else:
        in_specs.append(pl.BlockSpec((C, H), lambda i: (0, 0)))
        args.append(layer["readout_w"])
    return pl.pallas_call(
        functools.partial(_epilogue_kernel, use_sc=use_sc, nonlinear=nonlinear),
        out_shape=(jax.ShapeDtypeStruct((num_p, C), jnp.float32),
                   jax.ShapeDtypeStruct((num_p, H), jnp.float32)),
        grid_spec=pltpu.PrefetchScalarGridSpec(
            num_scalar_prefetch=0, grid=grid,
            in_specs=in_specs,
            out_specs=[pl.BlockSpec((tn, C), lambda i: (i, 0)),
                       pl.BlockSpec((tn, H), lambda i: (i, 0))]),
        compiler_params=pltpu.CompilerParams(dimension_semantics=("parallel",)),
    )(*args)


# --------------------------- cheap per-edge glue -----------------------------
def spherical_harmonics(u):
    """Component-normalized real spherical harmonics, l = 0..3 (e3nn-style)."""
    x, y, z = u[:, 0], u[:, 1], u[:, 2]
    s3, s5, s15 = np.sqrt(3.0), np.sqrt(5.0), np.sqrt(15.0)
    l0 = [jnp.ones_like(x)]
    l1 = [s3 * y, s3 * z, s3 * x]
    l2 = [s15 * x * y, s15 * y * z, 0.5 * s5 * (3 * z * z - 1.0),
          s15 * x * z, 0.5 * s15 * (x * x - y * y)]
    c358, c105 = np.sqrt(35.0 / 8.0), np.sqrt(105.0)
    c218, c7, c1052 = np.sqrt(21.0 / 8.0), 0.5 * np.sqrt(7.0), 0.5 * np.sqrt(105.0)
    l3 = [c358 * y * (3 * x * x - y * y), c105 * x * y * z,
          c218 * y * (5 * z * z - 1.0), c7 * z * (5 * z * z - 3.0),
          c218 * x * (5 * z * z - 1.0), c1052 * z * (x * x - y * y),
          c358 * x * (x * x - 3 * y * y)]
    return jnp.stack(l0 + l1 + l2 + l3, axis=-1)   # [E, 16]


def radial_embedding(lengths):
    """Bessel basis * polynomial cutoff (radial_type='bessel')."""
    r = lengths                                            # [E, 1]
    n = jnp.arange(1, NUM_BESSEL + 1, dtype=jnp.float32)[None, :]
    bessel = np.sqrt(2.0 / R_MAX) * jnp.sin(n * np.pi * r / R_MAX) / jnp.maximum(r, 1e-12)
    p = float(P_CUT)
    x = r / R_MAX
    cutoff = (1.0 - (p + 1) * (p + 2) / 2 * x ** p + p * (p + 2) * x ** (p + 1)
              - p * (p + 1) / 2 * x ** (p + 2))
    cutoff = cutoff * (x < 1.0).astype(jnp.float32)
    return bessel * cutoff                                  # [E, NUM_BESSEL]


# ----------------------------- parameter init --------------------------------
def init_params(key):
    keys = iter(jax.random.split(key, 64))

    def nrm(shape, fan_in):
        return jax.random.normal(next(keys), shape, jnp.float32) / np.sqrt(float(fan_in))

    params = {
        "atomic_energies": jax.random.normal(next(keys), (Z, H), jnp.float32),
        "emb_w": nrm((Z, C), Z),
        "scale": jnp.full((H,), SCALE, jnp.float32),
        "shift": jnp.full((H,), SHIFT, jnp.float32),
    }
    layers = []
    for i in range(NUM_INTERACTIONS):
        use_sc = i > 0        # use_sc_first = False (non-residual first interaction)
        p = {}
        if use_sc:
            p["skip_w"] = nrm((Z, C, C), C)          # element-indexed FCTP skip weights
        p["lin_up_w"] = nrm((C, C), C)
        p["rad_w0"] = nrm((NUM_BESSEL, RAD_HIDDEN), NUM_BESSEL)
        p["rad_w1"] = nrm((RAD_HIDDEN, RAD_HIDDEN), RAD_HIDDEN)
        p["rad_w2"] = nrm((RAD_HIDDEN, RAD_HIDDEN), RAD_HIDDEN)
        p["rad_w3"] = nrm((RAD_HIDDEN, NUM_L * C), RAD_HIDDEN)   # per-(l, channel) TP weights
        p["lin_msg_wl"] = nrm((NUM_L, C, C), C)      # block-diagonal (per-l) message linear
        p["contract_w"] = nrm((Z, C), 1.0)           # SymmetricContraction (nu=1, 0e)
        p["prod_lin_w"] = nrm((C, C), C)
        if i < NUM_INTERACTIONS - 1:
            p["readout_w"] = nrm((C, H), C)          # LinearReadoutBlock
        else:
            p["readout_w1"] = nrm((C, MLP_DIM), C)   # NonLinearReadoutBlock
            p["readout_w2"] = nrm((MLP_DIM, H), MLP_DIM)
        layers.append(p)
    params["layers"] = layers
    return params


# --------------------------------- forward -----------------------------------
def forward(params, data):
    node_attrs = jnp.asarray(data["node_attrs"], jnp.float32)    # [N, Z]
    positions = jnp.asarray(data["positions"], jnp.float32)      # [N, 3]
    edge_index = data["edge_index"]                              # [2, E]
    shifts = jnp.asarray(data["shifts"], jnp.float32)            # [E, 3]
    batch = data["batch"]                                        # [N]
    ptr = data["ptr"]                                            # [G+1]

    N = node_attrs.shape[0]
    E = edge_index.shape[1]
    G = ptr.shape[0] - 1
    node_heads = jnp.zeros((N,), jnp.int32)                      # no 'head' key
    arange_n = jnp.arange(N)
    displacement = jnp.zeros((G, 3, 3), jnp.float32)

    num_p = _round_up(N, 8)
    ep = _round_up(E, 8)
    attrs_p = jnp.pad(node_attrs, ((0, num_p - N), (0, 0)))      # padded once, reused

    # ---- node embedding + atomic reference energies (one fused kernel) ----
    node_feats, node_e0_all = pallas_embed(attrs_p, params["emb_w"],
                                           params["atomic_energies"])
    node_e0 = node_e0_all[:N][arange_n, node_heads]              # [N]
    e0 = jax.ops.segment_sum(node_e0, batch, num_segments=G)     # [G]

    # ---- edge geometry / spherical harmonics / radial basis (JAX glue) ----
    sender, receiver = edge_index[0], edge_index[1]
    vectors = positions[receiver] - positions[sender] + shifts   # [E, 3]
    lengths = jnp.linalg.norm(vectors, axis=-1, keepdims=True)   # [E, 1]
    sh = spherical_harmonics(vectors / jnp.maximum(lengths, 1e-12))   # [E, 16]
    edge_feats = radial_embedding(lengths)                       # [E, 8]

    sh_p = jnp.pad(sh, ((0, ep - E), (0, 0)))                    # padded edges contribute 0
    ef_p = jnp.pad(edge_feats, ((0, ep - E), (0, 0)))
    send_p = jnp.pad(sender.astype(jnp.int32), (0, ep - E))
    recv_p = jnp.pad(receiver.astype(jnp.int32), (0, ep - E))

    pair_node_energy = jnp.zeros_like(node_e0)                   # pair_repulsion=False
    node_es_list = [pair_node_energy]
    node_feats_list = []

    for i, layer in enumerate(params["layers"]):
        use_sc = i > 0
        nonlinear = i == NUM_INTERACTIONS - 1

        # interaction prologue: lin_up + (element-indexed) skip connection
        nf_up, sc = pallas_node_prologue(node_feats, attrs_p, layer, use_sc)
        # TODO(synk): sender gather could move in-kernel via scalar-prefetched DMA gather.
        sf_p = jnp.take(nf_up, send_p, axis=0)                   # [Ep, C]

        # fused edge pipeline: radial MLP + TP + per-l linear + scatter-sum
        message = pallas_edge_message(recv_p, ef_p, sh_p, sf_p, layer, num_p)  # [Np, 16*C]

        # product basis + residual + readout
        node_feats, es = pallas_node_epilogue(message, attrs_p, sc, layer,
                                              use_sc, nonlinear)
        node_feats_list.append(node_feats[:N])
        node_es_list.append(es[:N][arange_n, node_heads])

    node_feats_out = jnp.concatenate(node_feats_list, axis=-1)   # [N, 2*C]
    node_inter_es = jnp.sum(jnp.stack(node_es_list, axis=0), axis=0)    # [N]
    node_inter_es = params["scale"][node_heads] * node_inter_es + params["shift"][node_heads]
    inter_e = jax.ops.segment_sum(node_inter_es, batch, num_segments=G)  # [G]
    total_energy = e0 + inter_e
    node_energy = node_e0 + node_inter_es

    # TODO(synk): forces/virials/stress/hessian require autodiff through pallas_call
    # (custom_vjp) — not computed here (compute_force=False path).
    return {
        "energy": total_energy,
        "node_energy": node_energy,
        "interaction_energy": inter_e,
        "forces": None,
        "edge_forces": None,
        "virials": None,
        "stress": None,
        "atomic_virials": None,
        "atomic_stresses": None,
        "hessian": None,
        "displacement": displacement,
        "node_feats": node_feats_out,
    }


# ----------------------------------- main ------------------------------------
if __name__ == "__main__":
    key = jax.random.PRNGKey(0)
    k_pos, k_elem, k_params = jax.random.split(key, 3)

    N_ATOMS, G = 8, 2
    batch = jnp.array([0, 0, 0, 0, 1, 1, 1, 1], jnp.int32)
    ptr = jnp.array([0, 4, 8], jnp.int32)
    positions = 1.5 * jax.random.normal(k_pos, (N_ATOMS, 3), jnp.float32)
    elems = jax.random.randint(k_elem, (N_ATOMS,), 0, Z)
    node_attrs = jax.nn.one_hot(elems, Z, dtype=jnp.float32)

    senders, receivers = [], []
    for g in range(G):
        nodes = list(range(g * 4, g * 4 + 4))
        for a_ in nodes:
            for b_ in nodes:
                if a_ != b_:
                    senders.append(a_)
                    receivers.append(b_)
    edge_index = jnp.array([senders, receivers], jnp.int32)       # [2, 24]
    shifts = jnp.zeros((edge_index.shape[1], 3), jnp.float32)

    data = {
        "node_attrs": node_attrs,
        "positions": positions,
        "edge_index": edge_index,
        "shifts": shifts,
        "batch": batch,
        "ptr": ptr,
        "cell": jnp.zeros((G, 3, 3), jnp.float32),
        "unit_shifts": jnp.zeros_like(shifts),
    }

    params = init_params(k_params)
    out = forward(params, data)
    jax.block_until_ready(out["energy"])
    jax.block_until_ready(out["node_energy"])
    jax.block_until_ready(out["node_feats"])
    assert out["energy"].shape == (G,)
    assert out["node_energy"].shape == (N_ATOMS,)
    assert out["node_feats"].shape == (N_ATOMS, 2 * C)
    assert bool(jnp.all(jnp.isfinite(out["energy"])))
    print("KERNEL_OK")
</pallas_src>

<mosaic_0001>
module attributes {stable_mosaic.version = 11 : i64} {
  func.func @_embed_kernel(%arg0: i32, %arg1: memref<8x4xf32, #tpu.memory_space<vmem>>, %arg2: memref<4x32xf32, #tpu.memory_space<vmem>>, %arg3: memref<4x1xf32, #tpu.memory_space<vmem>>, %arg4: memref<8x32xf32, #tpu.memory_space<vmem>>, %arg5: memref<8x1xf32, #tpu.memory_space<vmem>>) attributes {dimension_semantics = [#tpu.dimension_semantics<parallel>], iteration_bounds = array<i64: 1>, scalar_prefetch = 0 : i64, scratch_operands = 0 : i64, tpu.core_type = #tpu.core_type<tc>, window_params = [{transform_indices = @transform_0, window_bounds = array<i64: 8, 4>}, {pipeline_mode = #tpu.pipeline_mode<synchronous>, transform_indices = @transform_1, window_bounds = array<i64: 4, 32>}, {pipeline_mode = #tpu.pipeline_mode<synchronous>, transform_indices = @transform_2, window_bounds = array<i64: 4, 1>}, {transform_indices = @transform_3, window_bounds = array<i64: 8, 32>}, {transform_indices = @transform_4, window_bounds = array<i64: 8, 1>}]} {
    %c0 = arith.constant 0 : index
    %c0_0 = arith.constant 0 : index
    %0 = vector.load %arg1[%c0, %c0_0] : memref<8x4xf32, #tpu.memory_space<vmem>>, vector<8x4xf32>
    %c0_1 = arith.constant 0 : index
    %c0_2 = arith.constant 0 : index
    %1 = vector.load %arg2[%c0_1, %c0_2] : memref<4x32xf32, #tpu.memory_space<vmem>>, vector<4x32xf32>
    %cst = arith.constant dense<0.000000e+00> : vector<8x32xf32>
    %2 = tpu.matmul %0, %1, %cst {dimension_numbers = #tpu.dot_dimension_numbers<[1], [0], [0], [1], [0, 0, 1, 1], [], []>} : vector<8x4xf32>, vector<4x32xf32>, vector<8x32xf32> -> vector<8x32xf32>
    %c0_3 = arith.constant 0 : index
    %c0_4 = arith.constant 0 : index
    %3 = vector.load %arg4[%c0_3, %c0_4] : memref<8x32xf32, #tpu.memory_space<vmem>>, vector<8x32xf32>
    tpu.vector_store %arg4[%c0_3, %c0_4], %2 {strides = array<i32>} : memref<8x32xf32, #tpu.memory_space<vmem>>, vector<8x32xf32>,
    %c0_5 = arith.constant 0 : index
    %c0_6 = arith.constant 0 : index
    %4 = vector.load %arg3[%c0_5, %c0_6] : memref<4x1xf32, #tpu.memory_space<vmem>>, vector<4x1xf32>
    %cst_7 = arith.constant dense<0.000000e+00> : vector<8x1xf32>
    %5 = tpu.matmul %0, %4, %cst_7 {dimension_numbers = #tpu.dot_dimension_numbers<[1], [0], [0], [1], [0, 0, 1, 1], [], []>} : vector<8x4xf32>, vector<4x1xf32>, vector<8x1xf32> -> vector<8x1xf32>
    %c0_8 = arith.constant 0 : index
    %c0_9 = arith.constant 0 : index
    %6 = vector.load %arg5[%c0_8, %c0_9] : memref<8x1xf32, #tpu.memory_space<vmem>>, vector<8x1xf32>
    tpu.vector_store %arg5[%c0_8, %c0_9], %5 {strides = array<i32>} : memref<8x1xf32, #tpu.memory_space<vmem>>, vector<8x1xf32>,
    return
  }
  func.func @transform_0(%arg0: i32) -> (i32, i32) {
    %c0_i32 = arith.constant 0 : i32
    %c0_i32_0 = arith.constant 0 : i32
    return %arg0, %c0_i32 : i32, i32
  }
  func.func @transform_1(%arg0: i32) -> (i32, i32) {
    %c0_i32 = arith.constant 0 : i32
    %c0_i32_0 = arith.constant 0 : i32
    %c0_i32_1 = arith.constant 0 : i32
    return %c0_i32, %c0_i32_0 : i32, i32
  }
  func.func @transform_2(%arg0: i32) -> (i32, i32) {
    %c0_i32 = arith.constant 0 : i32
    %c0_i32_0 = arith.constant 0 : i32
    %c0_i32_1 = arith.constant 0 : i32
    return %c0_i32, %c0_i32_0 : i32, i32
  }
  func.func @transform_3(%arg0: i32) -> (i32, i32) {
    %c0_i32 = arith.constant 0 : i32
    %c0_i32_0 = arith.constant 0 : i32
    return %arg0, %c0_i32 : i32, i32
  }
  func.func @transform_4(%arg0: i32) -> (i32, i32) {
    %c0_i32 = arith.constant 0 : i32
    %c0_i32_0 = arith.constant 0 : i32
    return %arg0, %c0_i32 : i32, i32
  }
}

</mosaic_0001>

<llo_original>
// kernel: tpu_custom_call.1
$region0: #{tpu_custom_call.1}
  #allocation0 [shape = 'u32[]', space=smem, size = 0x4, offset = 0x4, fixed_abs, tag = 'smem constant byte address 0x4 - core index']
  #allocation1 [shape = 'u32[144,128]{1,0:T(1,128)}', space=vmem, size = 0x12000, scoped, tag = 'internal scratch']
  %s0 = inlined_call_operand.vmem [shape: f32[8,4], index: 0, kind: input, shape index: {}]
  %s1 = inlined_call_operand.vmem [shape: f32[4,32], index: 1, kind: input, shape index: {}]
  %s2 = inlined_call_operand.vmem [shape: f32[4,1], index: 2, kind: input, shape index: {}]
  %s3 = inlined_call_operand.hbm [shape: f32[8,32], index: 3, kind: output, shape index: {0}]
  %s4 = inlined_call_operand.vmem [shape: f32[8,1], index: 4, kind: output, shape index: {1}]
  %5 = xla_tuple %s3, %s4
  %s6 = sld [smem:[#allocation0]]
  $region30: #{tpu_custom_call.1} parent=0
    _
  %s8 = ssub.s32 1, %s6
  %s9 = scalar_select 0, %s8, %s6
  $region1: #{tpu_custom_call.1} parent=0
    #allocation2 [shape = 'u8[4096]{0}', space=vmem, size = 0x1000, scoped, tag = 'output window, operand 0, single buffered']
    #allocation3 [shape = 's32[1]{0}', space=sflag, size = 0x4, scoped, tag = 'scoped memory for tpu_custom_call.1']
    %10 = vsyncpa [#allocation3], 0
    // Predicated region
    $region2: #{tpu_custom_call.1} parent=1 // pred_check
      _
    $region3: #{tpu_custom_call.1} parent=1 // pred_check_branch
      %12 = sbr.rel (0) target = $region5
    $region4: #{tpu_custom_call.1} parent=1 // pred_region
      _
    $region5: #{tpu_custom_call.1} parent=1 // pred_fallthru
      _
    // Predicated region
    $region6: #{tpu_custom_call.1} parent=1 // pred_check
      _
    $region7: #{tpu_custom_call.1} parent=1 // pred_check_branch
      %14 = sbr.rel (0) target = $region9
    $region8: #{tpu_custom_call.1} parent=1 // pred_region
      _
    $region9: #{tpu_custom_call.1} parent=1 // pred_fallthru
      _
    // Predicated region
    $region10: #{tpu_custom_call.1} parent=1 // pred_check
      _
    $region11: #{tpu_custom_call.1} parent=1 // pred_check_branch
      %16 = sbr.rel (0) target = $region13
    $region12: #{tpu_custom_call.1} parent=1 // pred_region
      _
    $region13: #{tpu_custom_call.1} parent=1 // pred_fallthru
      _
    %v17 = vld [vmem:[%s0] sm:$0xff]
    %v18 = vld [vmem:[%s1] sm:$0xf]
    %vm19 = vcmask 31744
    %v21 = vsel %vm19, %v17, 0
    %vm23 = vcmask 1043456
    %v25 = vsel %vm23, %v18, 0
    %27 = vmatprep.subr.mxu0 0.0
    %28 = vmatpush1.msra.mxu0 %v25
    %29 = vmatprep.subr.mxu0 0.0
    %30 = vmatpush1.msra.mxu0 0.0
    %31 = vmatprep.subr.mxu0 0.0
    %32 = vmatpush1.msra.mxu0 0.0
    %33 = vmatprep.subr.mxu0 0.0
    %34 = vmatpush1.msra.mxu0 0.0
    %35 = vmatprep.subr.mxu0 0.0
    %36 = vmatpush1.msra.mxu0 0.0
    %37 = vmatprep.subr.mxu0 0.0
    %38 = vmatpush1.msra.mxu0 0.0
    %39 = vmatprep.subr.mxu0 0.0
    %40 = vmatpush1.msra.mxu0 0.0
    %41 = vmatprep.subr.mxu0 0.0
    %42 = vmatpush1.msra.mxu0 0.0
    %43 = vmatprep.subr.mxu0 0.0
    %44 = vmatpush1.msra.mxu0 0.0
    %45 = vmatprep.subr.mxu0 0.0
    %46 = vmatpush1.msra.mxu0 0.0
    %47 = vmatprep.subr.mxu0 0.0
    %48 = vmatpush1.msra.mxu0 0.0
    %49 = vmatprep.subr.mxu0 0.0
    %50 = vmatpush1.msra.mxu0 0.0
    %51 = vmatprep.subr.mxu0 0.0
    %52 = vmatpush1.msra.mxu0 0.0
    %53 = vmatprep.subr.mxu0 0.0
    %54 = vmatpush1.msra.mxu0 0.0
    %55 = vmatprep.subr.mxu0 0.0
    %56 = vmatpush1.msra.mxu0 0.0
    %57 = vmatprep.subr.mxu0 0.0
    %58 = vmatpush1.msra.mxu0 0.0
    %59 = vmatprep.subr.mxu0 0.0
    %60 = vmatpush1.msra.mxu0 0.0
    %61 = vmatprep.subr.mxu0 0.0
    %62 = vmatpush1.msra.mxu0 0.0
    %63 = vmatprep.subr.mxu0 0.0
    %64 = vmatpush1.msra.mxu0 0.0
    %65 = vmatprep.subr.mxu0 0.0
    %66 = vmatpush1.msra.mxu0 0.0
    %67 = vmatprep.subr.mxu0 0.0
    %68 = vmatpush1.msra.mxu0 0.0
    %69 = vmatprep.subr.mxu0 0.0
    %70 = vmatpush1.msra.mxu0 0.0
    %71 = vmatprep.subr.mxu0 0.0
    %72 = vmatpush1.msra.mxu0 0.0
    %73 = vmatprep.subr.mxu0 0.0
    %74 = vmatpush1.msra.mxu0 0.0
    %75 = vmatprep.subr.mxu0 0.0
    %76 = vmatpush1.msra.mxu0 0.0
    %77 = vmatprep.subr.mxu0 0.0
    %78 = vmatpush1.msra.mxu0 0.0
    %79 = vmatprep.subr.mxu0 0.0
    %80 = vmatpush1.msra.mxu0 0.0
    %81 = vmatprep.subr.mxu0 0.0
    %82 = vmatpush1.msra.mxu0 0.0
    %83 = vmatprep.subr.mxu0 0.0
    %84 = vmatpush1.msra.mxu0 0.0
    %85 = vmatprep.subr.mxu0 0.0
    %86 = vmatpush1.msra.mxu0 0.0
    %87 = vmatprep.subr.mxu0 0.0
    %88 = vmatpush1.msra.mxu0 0.0
    %89 = vmatprep.subr.mxu0 0.0
    %90 = vmatpush1.msra.mxu0 0.0
    %91 = vmatprep.mubr.f32.mxu0 0.0
    %92 = vmatmul.mubr.f32.gmra.mrb[0].mxu0 %v21
    %v93 = vpop.f32.mrb[0].mxu0
    %v94 = vadd.f32 0.0, %v93
    %v95 = vpop.f32.mrb[0].mxu0
    %96 = vdwg.mxu0
    %vm97 = vcmask 261120
    %98 = vst.msk [vmem:[#allocation2] sm:$0xff] %vm97, %v94
    %v99 = vld [vmem:[%s2] sm:$0xf]
    %v101 = vsel %vm23, %v99, 0
    %103 = vmatprep.subr.mxu0 0.0
    %104 = vmatpush1.msra.mxu0 %v101
    %105 = vmatprep.subr.mxu0 0.0
    %106 = vmatpush1.msra.mxu0 0.0
    %107 = vmatprep.subr.mxu0 0.0
    %108 = vmatpush1.msra.mxu0 0.0
    %109 = vmatprep.subr.mxu0 0.0
    %110 = vmatpush1.msra.mxu0 0.0
    %111 = vmatprep.subr.mxu0 0.0
    %112 = vmatpush1.msra.mxu0 0.0
    %113 = vmatprep.subr.mxu0 0.0
    %114 = vmatpush1.msra.mxu0 0.0
    %115 = vmatprep.subr.mxu0 0.0
    %116 = vmatpush1.msra.mxu0 0.0
    %117 = vmatprep.subr.mxu0 0.0
    %118 = vmatpush1.msra.mxu0 0.0
    %119 = vmatprep.subr.mxu0 0.0
    %120 = vmatpush1.msra.mxu0 0.0
    %121 = vmatprep.subr.mxu0 0.0
    %122 = vmatpush1.msra.mxu0 0.0
    %123 = vmatprep.subr.mxu0 0.0
    %124 = vmatpush1.msra.mxu0 0.0
    %125 = vmatprep.subr.mxu0 0.0
    %126 = vmatpush1.msra.mxu0 0.0
    %127 = vmatprep.subr.mxu0 0.0
    %128 = vmatpush1.msra.mxu0 0.0
    %129 = vmatprep.subr.mxu0 0.0
    %130 = vmatpush1.msra.mxu0 0.0
    %131 = vmatprep.subr.mxu0 0.0
    %132 = vmatpush1.msra.mxu0 0.0
    %133 = vmatprep.subr.mxu0 0.0
    %134 = vmatpush1.msra.mxu0 0.0
    %135 = vmatprep.subr.mxu0 0.0
    %136 = vmatpush1.msra.mxu0 0.0
    %137 = vmatprep.subr.mxu0 0.0
    %138 = vmatpush1.msra.mxu0 0.0
    %139 = vmatprep.subr.mxu0 0.0
    %140 = vmatpush1.msra.mxu0 0.0
    %141 = vmatprep.subr.mxu0 0.0
    %142 = vmatpush1.msra.mxu0 0.0
    %143 = vmatprep.subr.mxu0 0.0
    %144 = vmatpush1.msra.mxu0 0.0
    %145 = vmatprep.subr.mxu0 0.0
    %146 = vmatpush1.msra.mxu0 0.0
    %147 = vmatprep.subr.mxu0 0.0
    %148 = vmatpush1.msra.mxu0 0.0
    %149 = vmatprep.subr.mxu0 0.0
    %150 = vmatpush1.msra.mxu0 0.0
    %151 = vmatprep.subr.mxu0 0.0
    %152 = vmatpush1.msra.mxu0 0.0
    %153 = vmatprep.subr.mxu0 0.0
    %154 = vmatpush1.msra.mxu0 0.0
    %155 = vmatprep.subr.mxu0 0.0
    %156 = vmatpush1.msra.mxu0 0.0
    %157 = vmatprep.subr.mxu0 0.0
    %158 = vmatpush1.msra.mxu0 0.0
    %159 = vmatprep.subr.mxu0 0.0
    %160 = vmatpush1.msra.mxu0 0.0
    %161 = vmatprep.subr.mxu0 0.0
    %162 = vmatpush1.msra.mxu0 0.0
    %163 = vmatprep.subr.mxu0 0.0
    %164 = vmatpush1.msra.mxu0 0.0
    %165 = vmatprep.subr.mxu0 0.0
    %166 = vmatpush1.msra.mxu0 0.0
    %167 = vmatprep.mubr.f32.mxu0 0.0
    %168 = vmatmul.mubr.f32.gmra.mrb[0].mxu0 %v21
    %v169 = vpop.f32.mrb[0].mxu0
    %v170 = vadd.f32 0.0, %v169
    %v171 = vpop.f32.mrb[0].mxu0
    %172 = vdwg.mxu0
    %vm173 = vcmask 7168
    %174 = vst.msk [vmem:[%s4] sm:$0xff] %vm173, %v170
    // Predicated region
    $region14: #{tpu_custom_call.1} parent=1 // pred_check
      _
    $region15: #{tpu_custom_call.1} parent=1 // pred_check_branch
      %176 = sbr.rel (0) target = $region17
    $region16: #{tpu_custom_call.1} parent=1 // pred_region
      %s178 = ssub.s32 128, 128
      %179 = vsyncadd [#allocation3], %s178
      %s181 = sshll.u32 [#allocation2], 4
      %s182 = int_to_ptr.vmem [resolvable:$true] %s181
      %184 = dma.vmem_to_hbm [thread:$0]  %s182, 128, %s3, [#allocation3]
    $region17: #{tpu_custom_call.1} parent=1 // pred_fallthru
      _
    // Predicated region
    $region18: #{tpu_custom_call.1} parent=1 // pred_check
      _
    $region19: #{tpu_custom_call.1} parent=1 // pred_check_branch
      %186 = sbr.rel (0) target = $region21
    $region20: #{tpu_custom_call.1} parent=1 // pred_region
      _
    $region21: #{tpu_custom_call.1} parent=1 // pred_fallthru
      _
    // Predicated region
    $region22: #{tpu_custom_call.1} parent=1 // pred_check
      _
    $region23: #{tpu_custom_call.1} parent=1 // pred_check_branch
      %188 = sbr.rel (0) target = $region25
    $region24: #{tpu_custom_call.1} parent=1 // pred_region
      %189 = dma.done [#allocation3], 128
    $region25: #{tpu_custom_call.1} parent=1 // pred_fallthru
      _
    // Predicated region
    $region26: #{tpu_custom_call.1} parent=1 // pred_check
      _
    $region27: #{tpu_custom_call.1} parent=1 // pred_check_branch
      %191 = sbr.rel (0) target = $region29
    $region28: #{tpu_custom_call.1} parent=1 // pred_region
      _
    $region29: #{tpu_custom_call.1} parent=1 // pred_fallthru
      _
    %192 = vsyncpa [#allocation3], 1

</llo_original>
